<compile_context>
chip_gen: v6e
topology: v6e:2x2x1
jax: 0.10.0
libtpu: 0.0.40
codegen_flags: <defaults>
</compile_context>

<pallas_src>
import functools
import math

import jax
import jax.numpy as jnp
from jax.experimental import pallas as pl
from jax.experimental.pallas import tpu as pltpu


# ----------------------------- tiling helpers --------------------------------

_TARGET_BLOCK_BYTES = 2 << 20   # ~2 MiB per input block; with double-buffered
                                # in+out that is <= ~8 MiB resident, well under
                                # the 32 MiB scoped / 64 MiB physical VMEM of
                                # v7x (and trivially under v5e/v6e).


def _pick_tile(extent, unit_elems, elem_bytes, quantum):
    """Pick a tile along one axis.

    Returns a divisor of `extent` that is a multiple of `quantum` and whose
    block footprint (tile * unit_elems * elem_bytes) is ~_TARGET_BLOCK_BYTES.
    Falls back to the full extent when `extent` is not a multiple of
    `quantum` (a block equal to the full dim is always legal).
    """
    if extent <= quantum or extent % quantum != 0:
        # TODO(synk): pad/mask instead of one full-extent block for very large
        # extents that are not a multiple of `quantum`.
        return extent
    unit_bytes = max(1, unit_elems * elem_bytes)
    want = (_TARGET_BLOCK_BYTES // (unit_bytes * quantum)) * quantum
    want = max(quantum, min(extent, want))
    d = want
    steps = 0
    while d >= quantum and steps < 1024:
        if extent % d == 0:
            return d
        d -= quantum
        steps += 1
    # Guaranteed valid fallback: divides extent, multiple of quantum, <= want.
    return math.gcd(extent, want)


def _lane_factor(n):
    """Factor n elements into (rows, lanes) with lanes a multiple of 128."""
    for c in (4096, 2048, 1024, 512, 256, 128):
        if n % c == 0:
            return n // c, c
    return None


def _legacy_softmax_dim(ndim):
    # Mirrors torch.nn.functional._get_softmax_dim (legacy implicit dim).
    return 0 if ndim in (0, 1, 3) else 1


# ----------------------------- kernels --------------------------------------

def _make_elementwise_kernel(fn, native_bf16):
    def kernel(x_ref, o_ref):
        x = x_ref[...]
        if not (native_bf16 and x.dtype == jnp.bfloat16):
            x = x.astype(jnp.float32)
        o_ref[...] = fn(x).astype(o_ref.dtype)
    return kernel


_tanh_kernel = _make_elementwise_kernel(jnp.tanh, native_bf16=True)
# sigmoid: EUP exp + EUP approx-reciprocal; keep f32 math for accuracy.
_sigmoid_kernel = _make_elementwise_kernel(
    lambda x: pl.reciprocal(1.0 + jnp.exp(-x), approx=True), native_bf16=False)


def _softmax_kernel(x_ref, o_ref, *, axis, log):
    x = x_ref[...].astype(jnp.float32)
    m = jnp.max(x, axis=axis, keepdims=True)
    shifted = x - m
    if log:
        lse = jnp.log(jnp.sum(jnp.exp(shifted), axis=axis, keepdims=True))
        o_ref[...] = (shifted - lse).astype(o_ref.dtype)
    else:
        e = jnp.exp(shifted)
        denom = jnp.sum(e, axis=axis, keepdims=True)
        o_ref[...] = (e * pl.reciprocal(denom, approx=True)).astype(o_ref.dtype)


def _argmax_kernel(x_ref, o_ref, *, axis):
    # argmax along `axis` (-1: lanes, -2: sublanes), first occurrence wins;
    # NaN is treated as the maximum (first NaN), matching torch.argmax.
    # TODO(synk): integer inputs with |value| > 2**24 lose precision through
    # the f32 compare path; torch also returns int64 (we return int32).
    x = x_ref[...].astype(jnp.float32)
    red_dim = axis % x.ndim
    n = x.shape[red_dim]
    m = jnp.max(x, axis=axis, keepdims=True)
    idx = jax.lax.broadcasted_iota(jnp.int32, x.shape, dimension=red_dim)
    hit = (x == m) | jnp.isnan(x)
    masked = jnp.where(hit, idx, jnp.int32(n))
    o_ref[...] = jnp.min(masked, axis=axis, keepdims=True).astype(jnp.int32)


def _flat_argmax_kernel(x_ref, o_ref, bv_ref, bi_ref, *, lane_width):
    # Tiled flat argmax over a lane-dense [rows, C] slab (row-major, so the
    # local flat index r*C + c equals the flat index in the original tensor).
    # A (best value, best index) pair is carried in VMEM across the grid;
    # blocks walk rows in increasing order, so strictly-greater comparisons
    # keep the earliest occurrence. NaN beats any finite value (first NaN
    # wins), matching torch.argmax.
    # TODO(synk): flat indices are int32; tensors with >= 2**31 elements
    # would need an int64 (split hi/lo) index path.
    t = pl.program_id(0)
    tm = x_ref.shape[0]

    @pl.when(t == 0)
    def _():
        bv_ref[...] = jnp.full(bv_ref.shape, -jnp.inf, bv_ref.dtype)
        bi_ref[...] = jnp.zeros(bi_ref.shape, bi_ref.dtype)

    x = x_ref[...].astype(jnp.float32)                           # (tm, C)
    row = jax.lax.broadcasted_iota(jnp.int32, x.shape, 0)
    col = jax.lax.broadcasted_iota(jnp.int32, x.shape, 1)
    flat = row * jnp.int32(lane_width) + col                     # local index

    m_row = jnp.max(x, axis=-1, keepdims=True)                   # (tm, 1)
    m_all = jnp.max(m_row, axis=0, keepdims=True)                # (1, 1)
    hit = (x == m_all) | jnp.isnan(x)
    big = jnp.int32(tm * lane_width)
    loc_row = jnp.min(jnp.where(hit, flat, big), axis=-1, keepdims=True)
    loc_all = jnp.min(loc_row, axis=0, keepdims=True)            # (1, 1)
    gidx = loc_all + t * (tm * lane_width)

    cur_v = bv_ref[...]
    cur_i = bi_ref[...]
    # strictly-greater keeps the earliest occurrence; a NaN beats any finite.
    take = (m_all > cur_v) | (jnp.isnan(m_all) & jnp.logical_not(jnp.isnan(cur_v)))
    bv_ref[...] = jnp.where(take, m_all, cur_v)
    bi_ref[...] = jnp.where(take, gidx, cur_i)

    @pl.when(t == pl.num_programs(0) - 1)
    def _():
        o_ref[...] = bi_ref[...]


# ----------------------------- pallas_call launchers -------------------------

def _launch_2d(kernel, x2d, out_last, out_dtype):
    """Row-tiled launch over a [rows, C] slab; reduction/elementwise on lanes."""
    rows, c = x2d.shape
    elem = x2d.dtype.itemsize
    tm = _pick_tile(rows, c, elem, quantum=8)
    grid = (rows // tm,)
    return pl.pallas_call(
        kernel,
        out_shape=jax.ShapeDtypeStruct((rows, out_last), out_dtype),
        grid_spec=pltpu.PrefetchScalarGridSpec(
            num_scalar_prefetch=0,
            grid=grid,
            in_specs=[pl.BlockSpec((tm, c), lambda i: (i, 0))],
            out_specs=pl.BlockSpec((tm, out_last), lambda i: (i, 0)),
        ),
        compiler_params=pltpu.CompilerParams(
            dimension_semantics=("parallel",)),
    )(x2d)


def _launch_3d_sublane(kernel, x3, out_c, out_dtype):
    """Launch over a [lead, C, trailing] slab; reduction on the sublane axis.

    Keeps the trailing (spatial) axis lane-dense and avoids any transpose.
    """
    l, c, t = x3.shape
    elem = x3.dtype.itemsize
    tt = _pick_tile(t, c, elem, quantum=128)
    tl = _pick_tile(l, c * t, elem, quantum=1) if tt == t else 1
    grid = (l // tl, t // tt)
    return pl.pallas_call(
        kernel,
        out_shape=jax.ShapeDtypeStruct((l, out_c, t), out_dtype),
        grid_spec=pltpu.PrefetchScalarGridSpec(
            num_scalar_prefetch=0,
            grid=grid,
            in_specs=[pl.BlockSpec((tl, c, tt), lambda i, j: (i, 0, j))],
            out_specs=pl.BlockSpec((tl, out_c, tt), lambda i, j: (i, 0, j)),
        ),
        compiler_params=pltpu.CompilerParams(
            dimension_semantics=("parallel", "parallel")),
    )(x3)


def _launch_flat_argmax(x_flat):
    """Tiled argmax over the whole (flattened) tensor, lane-dense blocks."""
    n = x_flat.shape[0]
    fact = _lane_factor(n)
    if fact is None:
        fact = (1, n)          # small / oddly sized: single lane-row slab
    rows, c = fact
    x2 = x_flat.reshape(rows, c)
    elem = x_flat.dtype.itemsize
    tm = _pick_tile(rows, c, elem, quantum=8)
    grid = (rows // tm,)
    out = pl.pallas_call(
        functools.partial(_flat_argmax_kernel, lane_width=c),
        out_shape=jax.ShapeDtypeStruct((1, 1), jnp.int32),
        grid_spec=pltpu.PrefetchScalarGridSpec(
            num_scalar_prefetch=0,
            grid=grid,
            in_specs=[pl.BlockSpec((tm, c), lambda i: (i, 0))],
            out_specs=pl.BlockSpec((1, 1), lambda i: (0, 0)),
            scratch_shapes=[pltpu.VMEM((1, 1), jnp.float32),
                            pltpu.VMEM((1, 1), jnp.int32)],
        ),
        compiler_params=pltpu.CompilerParams(
            dimension_semantics=("arbitrary",)),
    )(x2)
    return out.reshape(())


# ----------------------------- Activation module ----------------------------

class Activation:
    """JAX/Pallas port of the PyTorch `Activation` wrapper."""

    def __init__(self, name, **params):
        self.name = name
        self.params = dict(params)
        if name is None or name == 'identity':
            # nn.Identity: pure no-op -> do NOT launch a copy kernel.
            self._fn = lambda x: x
        elif name == 'sigmoid':
            self._fn = functools.partial(self._elementwise, _sigmoid_kernel)
        elif name == 'tanh':
            self._fn = functools.partial(self._elementwise, _tanh_kernel)
        elif name == 'softmax2d':
            self._fn = functools.partial(self._softmax, dim=1)
        elif name == 'softmax':
            self._fn = functools.partial(self._softmax,
                                         dim=params.get('dim', None))
        elif name == 'logsoftmax':
            self._fn = functools.partial(self._logsoftmax,
                                         dim=params.get('dim', None))
        elif name == 'argmax':
            self._fn = functools.partial(self._argmax,
                                         dim=params.get('dim', None))
        elif name == 'argmax2d':
            self._fn = functools.partial(self._argmax, dim=1)
        elif callable(name):
            # TODO(synk): arbitrary user callables run as plain JAX, not as a
            # Pallas kernel.
            self._fn = name(**params)
        else:
            raise ValueError(
                'Activation should be callable/sigmoid/softmax/logsoftmax/'
                'tanh/None; got {}'.format(name))

    def __call__(self, x):
        return self._fn(x)

    # --- elementwise ops: flatten to a lane-dense [rows, C] slab -------------
    def _elementwise(self, kernel, x):
        if x.size == 0:
            return x
        shape = x.shape
        n = x.size
        fact = _lane_factor(n)
        if fact is None:
            # No multiple-of-128 factorization: fall back to the natural
            # contiguous [rows, last_dim] view (still a free reshape).
            fact = (n // shape[-1], shape[-1]) if x.ndim >= 2 else (1, n)
        x2d = x.reshape(fact)
        out = _launch_2d(kernel, x2d, fact[1], x.dtype)
        return out.reshape(shape)

    # --- softmax / logsoftmax -------------------------------------------------
    def _softmax(self, x, dim=None):
        if dim is None:
            dim = _legacy_softmax_dim(x.ndim)
        return self._softmax_like(x, dim, log=False)

    def _logsoftmax(self, x, dim=None):
        if dim is None:
            dim = _legacy_softmax_dim(x.ndim)
        return self._softmax_like(x, dim, log=True)

    def _softmax_like(self, x, dim, log):
        nd = x.ndim
        dim = dim + nd if dim < 0 else dim
        shape = x.shape
        c = shape[dim]
        if dim == nd - 1:
            # Reduction over the last axis -> lanes.
            rows = math.prod(shape[:-1])
            x2d = x.reshape(rows, c)
            kernel = functools.partial(_softmax_kernel, axis=-1, log=log)
            out = _launch_2d(kernel, x2d, c, x.dtype)
            return out.reshape(shape)
        # Reduction over an inner axis (e.g. NCHW channels for softmax2d):
        # reshape (free, no transpose) to [lead, C, trailing] and reduce over
        # the sublane axis; trailing stays lane-dense.
        lead = math.prod(shape[:dim])
        trail = math.prod(shape[dim + 1:])
        x3 = x.reshape(lead, c, trail)
        kernel = functools.partial(_softmax_kernel, axis=-2, log=log)
        out = _launch_3d_sublane(kernel, x3, c, x.dtype)
        return out.reshape(shape)

    # --- argmax ----------------------------------------------------------------
    def _argmax(self, x, dim=None):
        if dim is None:
            # torch.argmax(x): argmax over the flattened tensor (tiled).
            return _launch_flat_argmax(x.reshape(-1))
        nd = x.ndim
        dim = dim + nd if dim < 0 else dim
        shape = x.shape
        c = shape[dim]
        if dim == nd - 1:
            rows = math.prod(shape[:-1])
            x2d = x.reshape(rows, c)
            kernel = functools.partial(_argmax_kernel, axis=-1)
            # TODO(synk): pack the per-row results lane-dense (XLU transpose)
            # instead of the (tm, 1) masked-store output.
            out = _launch_2d(kernel, x2d, 1, jnp.int32)
            return out.reshape(shape[:-1])
        # Inner-axis argmax (argmax2d over NCHW channels): sublane reduction,
        # lane-dense int32 output, no transpose.
        lead = math.prod(shape[:dim])
        trail = math.prod(shape[dim + 1:])
        x3 = x.reshape(lead, c, trail)
        kernel = functools.partial(_argmax_kernel, axis=-2)
        out = _launch_3d_sublane(kernel, x3, 1, jnp.int32)
        return out.reshape(shape[:dim] + shape[dim + 1:])


# ----------------------------- demo / self-check -----------------------------

if __name__ == "__main__":
    key = jax.random.PRNGKey(0)
    x = jax.random.normal(key, (2, 4, 16, 16), dtype=jnp.float32)  # NCHW

    outs = {}
    outs['identity'] = Activation('identity')(x)
    outs['sigmoid'] = Activation('sigmoid')(x)
    outs['tanh'] = Activation('tanh')(x)
    outs['softmax2d'] = Activation('softmax2d')(x)
    outs['softmax_last'] = Activation('softmax', dim=-1)(x)
    outs['logsoftmax_d1'] = Activation('logsoftmax', dim=1)(x)
    outs['argmax2d'] = Activation('argmax2d')(x)
    outs['argmax_last'] = Activation('argmax', dim=3)(x)
    outs['argmax_flat'] = Activation('argmax')(x)

    x_bf16 = x.astype(jnp.bfloat16)
    outs['tanh_bf16'] = Activation('tanh')(x_bf16)

    # NaN handling: torch.argmax treats NaN as the maximum.
    x_nan = x.at[0, 2, 3, 5].set(jnp.nan)
    outs['argmax2d_nan'] = Activation('argmax2d')(x_nan)
    outs['argmax_flat_nan'] = Activation('argmax')(x_nan)

    for v in outs.values():
        jax.block_until_ready(v)

    # Reference checks (approx-reciprocal paths use looser tolerances).
    assert outs['identity'] is x
    assert jnp.allclose(outs['sigmoid'], jax.nn.sigmoid(x), atol=1e-2)
    assert jnp.allclose(outs['tanh'], jnp.tanh(x), atol=1e-6)
    assert jnp.allclose(outs['softmax2d'], jax.nn.softmax(x, axis=1), atol=1e-2)
    assert jnp.allclose(jnp.sum(outs['softmax2d'], axis=1), 1.0, atol=2e-2)
    assert jnp.allclose(outs['softmax_last'], jax.nn.softmax(x, axis=-1),
                        atol=1e-2)
    assert jnp.allclose(outs['logsoftmax_d1'], jax.nn.log_softmax(x, axis=1),
                        atol=1e-5)
    assert outs['argmax2d'].shape == (2, 16, 16)
    assert jnp.array_equal(outs['argmax2d'],
                           jnp.argmax(x, axis=1).astype(jnp.int32))
    assert jnp.array_equal(outs['argmax_last'],
                           jnp.argmax(x, axis=-1).astype(jnp.int32))
    assert jnp.array_equal(outs['argmax_flat'],
                           jnp.argmax(x).astype(jnp.int32))
    assert outs['tanh_bf16'].dtype == jnp.bfloat16
    assert jnp.allclose(outs['tanh_bf16'].astype(jnp.float32), jnp.tanh(x),
                        atol=5e-2)
    # NaN wins (first occurrence), matching torch.argmax.
    assert int(outs['argmax2d_nan'][0, 3, 5]) == 2
    nan_flat_idx = ((0 * 4 + 2) * 16 + 3) * 16 + 5
    assert int(outs['argmax_flat_nan']) == nan_flat_idx

    print("KERNEL_OK")
</pallas_src>

<mosaic_0001>
module attributes {stable_mosaic.version = 11 : i64} {
  func.func @kernel(%arg0: i32, %arg1: memref<1x2048xf32, #tpu.memory_space<vmem>>, %arg2: memref<1x2048xf32, #tpu.memory_space<vmem>>) attributes {dimension_semantics = [#tpu.dimension_semantics<parallel>], iteration_bounds = array<i64: 1>, scalar_prefetch = 0 : i64, scratch_operands = 0 : i64, tpu.core_type = #tpu.core_type<tc>, window_params = [{transform_indices = @transform_0, window_bounds = array<i64: 1, 2048>}, {transform_indices = @transform_1, window_bounds = array<i64: 1, 2048>}]} {
    %c0 = arith.constant 0 : index
    %c0_0 = arith.constant 0 : index
    %0 = vector.load %arg1[%c0, %c0_0] : memref<1x2048xf32, #tpu.memory_space<vmem>>, vector<1x2048xf32>
    %cst = arith.constant 0.000000e+00 : f32
    %1 = vector.broadcast %cst : f32 to vector<1x2048xf32>
    %2 = arith.subf %1, %0 : vector<1x2048xf32>
    %3 = math.exp %2 : vector<1x2048xf32>
    %cst_1 = arith.constant 1.000000e+00 : f32
    %4 = vector.broadcast %cst_1 : f32 to vector<1x2048xf32>
    %5 = arith.addf %4, %3 : vector<1x2048xf32>
    %6 = tpu.reciprocal %5 {approx = true} : vector<1x2048xf32> -> vector<1x2048xf32>
    %c0_2 = arith.constant 0 : index
    %c0_3 = arith.constant 0 : index
    %7 = vector.load %arg2[%c0_2, %c0_3] : memref<1x2048xf32, #tpu.memory_space<vmem>>, vector<1x2048xf32>
    tpu.vector_store %arg2[%c0_2, %c0_3], %6 {strides = array<i32>} : memref<1x2048xf32, #tpu.memory_space<vmem>>, vector<1x2048xf32>,
    return
  }
  func.func @transform_0(%arg0: i32) -> (i32, i32) {
    %c0_i32 = arith.constant 0 : i32
    %c0_i32_0 = arith.constant 0 : i32
    return %arg0, %c0_i32 : i32, i32
  }
  func.func @transform_1(%arg0: i32) -> (i32, i32) {
    %c0_i32 = arith.constant 0 : i32
    %c0_i32_0 = arith.constant 0 : i32
    return %arg0, %c0_i32 : i32, i32
  }
}

</mosaic_0001>

<llo_original>
// kernel: tpu_custom_call.1
$region0: #{tpu_custom_call.1}
  #allocation0 [shape = 'u32[]', space=smem, size = 0x4, offset = 0x4, fixed_abs, tag = 'smem constant byte address 0x4 - core index']
  #allocation1 [shape = 'u32[144,128]{1,0:T(1,128)}', space=vmem, size = 0x12000, scoped, tag = 'internal scratch']
  %s0 = inlined_call_operand.hbm [shape: f32[1,2048], index: 0, kind: input, shape index: {}]
  %s1 = inlined_call_operand.hbm [shape: f32[1,2048], index: 1, kind: output, shape index: {}]
  %s2 = sld [smem:[#allocation0]]
  $region18: #{tpu_custom_call.1} parent=0
    _
  %s4 = ssub.s32 1, %s2
  %s5 = scalar_select 0, %s4, %s2
  $region1: #{tpu_custom_call.1} parent=0
    #allocation2 [shape = 'u8[8192]{0}', space=vmem, size = 0x2000, scoped, tag = 'input window, operand 0, single buffered']
    #allocation3 [shape = 's32[1]{0}', space=sflag, size = 0x4, scoped, tag = 'scoped memory for tpu_custom_call.1']
    #allocation4 [shape = 's32[1]{0}', space=sflag, size = 0x4, scoped, tag = 'scoped memory for tpu_custom_call.1']
    #allocation5 [shape = 'u8[8192]{0}', space=vmem, size = 0x2000, scoped, tag = 'output window, operand 0, single buffered']
    %6 = vsyncpa [#allocation3], 0
    %7 = vsyncpa [#allocation4], 0
    // Predicated region
    $region2: #{tpu_custom_call.1} parent=1 // pred_check
      _
    $region3: #{tpu_custom_call.1} parent=1 // pred_check_branch
      %9 = sbr.rel (0) target = $region5
    $region4: #{tpu_custom_call.1} parent=1 // pred_region
      %s11 = ssub.s32 256, 256
      %12 = vsyncadd [#allocation3], %s11
      %s14 = sshll.u32 [#allocation2], 4
      %s15 = int_to_ptr.vmem [resolvable:$true] %s14
      %17 = dma.hbm_to_vmem [thread:$0]  %s0, 256, %s15, [#allocation3]
    $region5: #{tpu_custom_call.1} parent=1 // pred_fallthru
      _
    // Predicated region
    $region6: #{tpu_custom_call.1} parent=1 // pred_check
      _
    $region7: #{tpu_custom_call.1} parent=1 // pred_check_branch
      %19 = sbr.rel (0) target = $region9
    $region8: #{tpu_custom_call.1} parent=1 // pred_region
      %20 = dma.done [#allocation3], 256
    $region9: #{tpu_custom_call.1} parent=1 // pred_fallthru
      _
    %v21 = vld [vmem:[#allocation2] sm:$0xff]
    %v22 = vld [vmem:[#allocation2 + $0x8] sm:$0xff]
    %v23 = vsub.f32 0.0, %v21
    %v24 = vsub.f32 0.0, %v22
    %v25 = vmul.f32 %v23, 1.442695
    %v26 = vpow.pop %v25
    %v27 = vmul.f32 %v24, 1.442695
    %v28 = vpow.pop %v27
    %v29 = vadd.f32 %v26, 1.0
    %v30 = vadd.f32 %v28, 1.0
    %v31 = vrcp.pop %v29
    %v32 = vrcp.pop %v30
    %33 = vst [vmem:[#allocation5] sm:$0xff] %v31
    %34 = vst [vmem:[#allocation5 + $0x8] sm:$0xff] %v32
    // Predicated region
    $region10: #{tpu_custom_call.1} parent=1 // pred_check
      _
    $region11: #{tpu_custom_call.1} parent=1 // pred_check_branch
      %36 = sbr.rel (0) target = $region13
    $region12: #{tpu_custom_call.1} parent=1 // pred_region
      %s38 = ssub.s32 256, 256
      %39 = vsyncadd [#allocation4], %s38
      %s41 = sshll.u32 [#allocation5], 4
      %s42 = int_to_ptr.vmem [resolvable:$true] %s41
      %44 = dma.vmem_to_hbm [thread:$0]  %s42, 256, %s1, [#allocation4]
    $region13: #{tpu_custom_call.1} parent=1 // pred_fallthru
      _
    // Predicated region
    $region14: #{tpu_custom_call.1} parent=1 // pred_check
      _
    $region15: #{tpu_custom_call.1} parent=1 // pred_check_branch
      %46 = sbr.rel (0) target = $region17
    $region16: #{tpu_custom_call.1} parent=1 // pred_region
      %47 = dma.done [#allocation4], 256
    $region17: #{tpu_custom_call.1} parent=1 // pred_fallthru
      _
    %48 = vsyncpa [#allocation3], 1
    %49 = vsyncpa [#allocation4], 1

</llo_original>
